<compile_context>
chip_gen: v5e
topology: v5e:2x2
jax: 0.10.0
libtpu: 0.0.40
codegen_flags: <defaults>
</compile_context>

<pallas_src>
import numpy as np
import jax
import jax.numpy as jnp
from jax.experimental import pallas as pl
from jax.experimental.pallas import tpu as pltpu


def _make_kernel(L, B, S, H):
    def kernel(f_ref, summ_ref, wb_ref, out_ref):
        f = f_ref[...].astype(jnp.float32)        # (L, B, S, H)   native layout
        summ = summ_ref[...].astype(jnp.float32)  # (L, B, 1, H)
        wb = wb_ref[...].astype(jnp.float32)      # (L, 1, 3, H)   packed params

        wf = wb[:, :, 0:1, :]                     # (L, 1, 1, H)   W[:, :H]
        ws = wb[:, :, 1:2, :]                     # (L, 1, 1, H)   W[:, H:]
        bias = wb[:, :, 2:3, 0:1]                 # (L, 1, 1, 1)   bias

        # --- per-layer 2H->1 linear: VPU multiply + lane reduce (H=32, no MXU) ---
        logit_f = jnp.sum(f * wf, axis=-1, keepdims=True)      # (L, B, S, 1)
        logit_s = jnp.sum(summ * ws, axis=-1, keepdims=True)   # (L, B, 1, 1)
        logits = logit_f + logit_s + bias                      # (L, B, S, 1)

        # --- softmax across layers (leading axis 0 -> cheap vreg-wise reduce) ---
        m = jnp.max(logits, axis=0, keepdims=True)             # (1, B, S, 1)
        e = jnp.exp(logits - m)                                # (L, B, S, 1)
        denom = jnp.sum(e, axis=0, keepdims=True)              # (1, B, S, 1)
        p = e / denom                                          # exact division

        # --- attention weighting: lane-broadcast of width-1 p over H lanes ---
        w = f * p                                              # (L, B, S, H)

        # --- bug-compatible torch regroup + sum over layers:
        #       weighted (B, L*S, H).view(L, B, S, H).sum(0)
        #     out[bp] = sum_lp weighted[b, l]   with (b, l) = divmod(lp*B + bp, L)
        #     (w here is layer-major: w[l, b] == weighted[b, l])
        for bp in range(B):
            acc = None
            for lp in range(L):
                b_idx, l_idx = divmod(lp * B + bp, L)
                term = w[l_idx, b_idx]                         # (S, H), static index
                acc = term if acc is None else acc + term
            out_ref[bp] = acc.astype(out_ref.dtype)            # full-tile store

    return kernel


def attention_pallas(features, summary, W, bias_vec):
    """features: (L,B,S,H), summary: (L,B,H), W: (L,2H), bias_vec: (L,)."""
    L, B, S, H = features.shape
    f32 = jnp.float32

    feats = features.astype(f32)                       # (L, B, S, H), no transpose
    summ4 = summary.astype(f32)[:, :, None, :]         # (L, B, 1, H), free reshape

    # One packed parameter operand: rows [wf, ws, bias-in-lane-0] -> (L, 1, 3, H).
    wrows = W.astype(f32).reshape(L, 2, H)             # free reshape: [:,0,:]=W[:, :H]
    brow = jnp.zeros((L, 1, H), f32).at[:, 0, 0].set(bias_vec.astype(f32))
    wb = jnp.concatenate([wrows, brow], axis=1)[:, None]   # (L, 1, 3, H), ~1 KiB

    kernel = _make_kernel(L, B, S, H)
    out = pl.pallas_call(
        kernel,
        out_shape=jax.ShapeDtypeStruct((B, S, H), features.dtype),
        in_specs=[pl.BlockSpec(memory_space=pltpu.MemorySpace.VMEM)] * 3,
        out_specs=pl.BlockSpec(memory_space=pltpu.MemorySpace.VMEM),
    )(feats, summ4, wb)
    return out


def attention_ref(features_list, summary_list, W, bias_vec, L, B, S, H):
    """Pure-JAX transcription of the PyTorch forward (for verification)."""
    attn_logits = []
    for i in range(L):
        x = jnp.concatenate(
            [features_list[i],
             jnp.broadcast_to(summary_list[i][:, None, :], (B, S, H))], -1)   # (B,S,2H)
        attn_logits.append(x @ W[i][:, None] + bias_vec[i])                   # (B,S,1)
    attn = jax.nn.softmax(jnp.concatenate(attn_logits, -1), -1)               # (B,S,L)
    feats_cat = jnp.concatenate(features_list, 1)                             # (B,L*S,H)
    attn_r = jnp.transpose(attn, (0, 2, 1)).reshape(B, L * S, 1)
    weighted = feats_cat * attn_r
    return weighted.reshape(L, B, S, H).sum(0)                                # (B,S,H)


if __name__ == "__main__":
    # args: num_layer=3, batch_size=2, sample_size=8, hid_units=32
    L, B, S, H = 3, 2, 8, 32

    key = jax.random.PRNGKey(0)
    k_feat, k_summ, k_w = jax.random.split(key, 3)

    features = jax.random.normal(k_feat, (L, B, S, H), dtype=jnp.float32)
    summary = jax.random.normal(k_summ, (L, B, H), dtype=jnp.float32)

    # Deterministic "xavier_normal_"-style init for the L linear layers (2H -> 1); bias = 0.
    std = float(np.sqrt(2.0 / (2 * H + 1)))
    W = jax.random.normal(k_w, (L, 2 * H), dtype=jnp.float32) * std
    bias_vec = jnp.zeros((L,), dtype=jnp.float32)

    out = attention_pallas(features, summary, W, bias_vec)
    out = jax.block_until_ready(out)

    ref = attention_ref([features[i] for i in range(L)],
                        [summary[i] for i in range(L)],
                        W, bias_vec, L, B, S, H)
    ref = jax.block_until_ready(ref)

    # Exact division in the softmax -> tight tolerance (catches any
    # permutation / indexing bug in the torch-style flat regroup).
    np.testing.assert_allclose(np.asarray(out), np.asarray(ref), rtol=1e-5, atol=1e-5)
    print("KERNEL_OK")
</pallas_src>

<mosaic_0001>
module attributes {stable_mosaic.version = 11 : i64} {
  func.func @kernel(%arg0: memref<3x2x8x32xf32, #tpu.memory_space<vmem>>, %arg1: memref<3x2x1x32xf32, #tpu.memory_space<vmem>>, %arg2: memref<3x1x3x32xf32, #tpu.memory_space<vmem>>, %arg3: memref<2x8x32xf32, #tpu.memory_space<vmem>>) attributes {dimension_semantics = [], scalar_prefetch = 0 : i64, scratch_operands = 0 : i64, tpu.core_type = #tpu.core_type<tc>} {
    %c0 = arith.constant 0 : index
    %c0_0 = arith.constant 0 : index
    %c0_1 = arith.constant 0 : index
    %c0_2 = arith.constant 0 : index
    %0 = vector.load %arg0[%c0, %c0_0, %c0_1, %c0_2] : memref<3x2x8x32xf32, #tpu.memory_space<vmem>>, vector<3x2x8x32xf32>
    %c0_3 = arith.constant 0 : index
    %c0_4 = arith.constant 0 : index
    %c0_5 = arith.constant 0 : index
    %c0_6 = arith.constant 0 : index
    %1 = vector.load %arg1[%c0_3, %c0_4, %c0_5, %c0_6] : memref<3x2x1x32xf32, #tpu.memory_space<vmem>>, vector<3x2x1x32xf32>
    %c0_7 = arith.constant 0 : index
    %c0_8 = arith.constant 0 : index
    %c0_9 = arith.constant 0 : index
    %c0_10 = arith.constant 0 : index
    %2 = vector.load %arg2[%c0_7, %c0_8, %c0_9, %c0_10] : memref<3x1x3x32xf32, #tpu.memory_space<vmem>>, vector<3x1x3x32xf32>
    %3 = vector.extract_strided_slice %2 {offsets = [0, 0, 0, 0], sizes = [3, 1, 1, 32], strides = [1, 1, 1, 1]} : vector<3x1x3x32xf32> to vector<3x1x1x32xf32>
    %4 = vector.extract_strided_slice %2 {offsets = [0, 0, 1, 0], sizes = [3, 1, 1, 32], strides = [1, 1, 1, 1]} : vector<3x1x3x32xf32> to vector<3x1x1x32xf32>
    %5 = vector.extract_strided_slice %2 {offsets = [0, 0, 2, 0], sizes = [3, 1, 1, 1], strides = [1, 1, 1, 1]} : vector<3x1x3x32xf32> to vector<3x1x1x1xf32>
    %6 = vector.broadcast %3 : vector<3x1x1x32xf32> to vector<3x2x8x32xf32>
    %7 = arith.mulf %0, %6 : vector<3x2x8x32xf32>
    %cst = arith.constant dense<0.000000e+00> : vector<3x2x8xf32>
    %8 = vector.multi_reduction <add>, %7, %cst [3] : vector<3x2x8x32xf32> to vector<3x2x8xf32>
    %9 = vector.shape_cast %8 : vector<3x2x8xf32> to vector<3x2x8x1xf32>
    %10 = vector.broadcast %4 : vector<3x1x1x32xf32> to vector<3x2x1x32xf32>
    %11 = arith.mulf %1, %10 : vector<3x2x1x32xf32>
    %cst_11 = arith.constant dense<0.000000e+00> : vector<3x2x1xf32>
    %12 = vector.multi_reduction <add>, %11, %cst_11 [3] : vector<3x2x1x32xf32> to vector<3x2x1xf32>
    %13 = vector.shape_cast %12 : vector<3x2x1xf32> to vector<3x2x1x1xf32>
    %14 = vector.broadcast %13 : vector<3x2x1x1xf32> to vector<3x2x8x1xf32>
    %15 = arith.addf %9, %14 : vector<3x2x8x1xf32>
    %16 = vector.broadcast %5 : vector<3x1x1x1xf32> to vector<3x2x8x1xf32>
    %17 = arith.addf %15, %16 : vector<3x2x8x1xf32>
    %cst_12 = arith.constant dense<0xFF800000> : vector<2x8x1xf32>
    %18 = vector.multi_reduction <maximumf>, %17, %cst_12 [0] : vector<3x2x8x1xf32> to vector<2x8x1xf32>
    %19 = vector.shape_cast %18 : vector<2x8x1xf32> to vector<1x2x8x1xf32>
    %20 = vector.broadcast %19 : vector<1x2x8x1xf32> to vector<3x2x8x1xf32>
    %21 = arith.subf %17, %20 : vector<3x2x8x1xf32>
    %22 = math.exp %21 : vector<3x2x8x1xf32>
    %cst_13 = arith.constant dense<0.000000e+00> : vector<2x8x1xf32>
    %23 = vector.multi_reduction <add>, %22, %cst_13 [0] : vector<3x2x8x1xf32> to vector<2x8x1xf32>
    %24 = vector.shape_cast %23 : vector<2x8x1xf32> to vector<1x2x8x1xf32>
    %25 = vector.broadcast %24 : vector<1x2x8x1xf32> to vector<3x2x8x1xf32>
    %26 = arith.divf %22, %25 : vector<3x2x8x1xf32>
    %27 = vector.broadcast %26 : vector<3x2x8x1xf32> to vector<3x2x8x32xf32>
    %28 = arith.mulf %0, %27 : vector<3x2x8x32xf32>
    %29 = vector.extract_strided_slice %28 {offsets = [0, 0, 0, 0], sizes = [1, 1, 8, 32], strides = [1, 1, 1, 1]} : vector<3x2x8x32xf32> to vector<1x1x8x32xf32>
    %30 = vector.shape_cast %29 : vector<1x1x8x32xf32> to vector<8x32xf32>
    %31 = vector.extract_strided_slice %28 {offsets = [2, 0, 0, 0], sizes = [1, 1, 8, 32], strides = [1, 1, 1, 1]} : vector<3x2x8x32xf32> to vector<1x1x8x32xf32>
    %32 = vector.shape_cast %31 : vector<1x1x8x32xf32> to vector<8x32xf32>
    %33 = arith.addf %30, %32 : vector<8x32xf32>
    %34 = vector.extract_strided_slice %28 {offsets = [1, 1, 0, 0], sizes = [1, 1, 8, 32], strides = [1, 1, 1, 1]} : vector<3x2x8x32xf32> to vector<1x1x8x32xf32>
    %35 = vector.shape_cast %34 : vector<1x1x8x32xf32> to vector<8x32xf32>
    %36 = arith.addf %33, %35 : vector<8x32xf32>
    %c0_14 = arith.constant 0 : index
    %c0_15 = arith.constant 0 : index
    %c0_16 = arith.constant 0 : index
    %37 = vector.load %arg3[%c0_14, %c0_15, %c0_16] : memref<2x8x32xf32, #tpu.memory_space<vmem>>, vector<1x8x32xf32>
    %38 = vector.shape_cast %37 : vector<1x8x32xf32> to vector<8x32xf32>
    %39 = vector.shape_cast %36 : vector<8x32xf32> to vector<1x8x32xf32>
    tpu.vector_store %arg3[%c0_14, %c0_15, %c0_16], %39 {strides = array<i32>} : memref<2x8x32xf32, #tpu.memory_space<vmem>>, vector<1x8x32xf32>,
    %40 = vector.extract_strided_slice %28 {offsets = [1, 0, 0, 0], sizes = [1, 1, 8, 32], strides = [1, 1, 1, 1]} : vector<3x2x8x32xf32> to vector<1x1x8x32xf32>
    %41 = vector.shape_cast %40 : vector<1x1x8x32xf32> to vector<8x32xf32>
    %42 = vector.extract_strided_slice %28 {offsets = [0, 1, 0, 0], sizes = [1, 1, 8, 32], strides = [1, 1, 1, 1]} : vector<3x2x8x32xf32> to vector<1x1x8x32xf32>
    %43 = vector.shape_cast %42 : vector<1x1x8x32xf32> to vector<8x32xf32>
    %44 = arith.addf %41, %43 : vector<8x32xf32>
    %45 = vector.extract_strided_slice %28 {offsets = [2, 1, 0, 0], sizes = [1, 1, 8, 32], strides = [1, 1, 1, 1]} : vector<3x2x8x32xf32> to vector<1x1x8x32xf32>
    %46 = vector.shape_cast %45 : vector<1x1x8x32xf32> to vector<8x32xf32>
    %47 = arith.addf %44, %46 : vector<8x32xf32>
    %c1 = arith.constant 1 : index
    %c0_17 = arith.constant 0 : index
    %c0_18 = arith.constant 0 : index
    %48 = vector.load %arg3[%c1, %c0_17, %c0_18] : memref<2x8x32xf32, #tpu.memory_space<vmem>>, vector<1x8x32xf32>
    %49 = vector.shape_cast %48 : vector<1x8x32xf32> to vector<8x32xf32>
    %50 = vector.shape_cast %47 : vector<8x32xf32> to vector<1x8x32xf32>
    tpu.vector_store %arg3[%c1, %c0_17, %c0_18], %50 {strides = array<i32>} : memref<2x8x32xf32, #tpu.memory_space<vmem>>, vector<1x8x32xf32>,
    return
  }
}

</mosaic_0001>

<llo_original>
// kernel: tpu_custom_call.1
$region0: #{tpu_custom_call.1}
  #allocation0 [shape = 'u32[]', space=smem, size = 0x4, offset = 0x4, fixed_abs, tag = 'smem constant byte address 0x4 - core index']
  #allocation1 [shape = 'u32[72,128]{1,0:T(1,128)}', space=vmem, size = 0x9000, scoped, tag = 'internal scratch']
  %s0 = inlined_call_operand.hbm [shape: f32[3,2,8,32], index: 0, kind: input, shape index: {}]
  %s1 = inlined_call_operand.vmem [shape: f32[3,2,1,32], index: 1, kind: input, shape index: {}]
  %s2 = inlined_call_operand.vmem [shape: f32[3,1,3,32], index: 2, kind: input, shape index: {}]
  %s3 = inlined_call_operand.hbm [shape: f32[2,8,32], index: 3, kind: output, shape index: {}]
  %s4 = sld [smem:[#allocation0]]
  $region26: #{tpu_custom_call.1} parent=0
    _
  %s6 = ssub.s32 1, %s4
  %s7 = scalar_select 0, %s6, %s4
  $region1: #{tpu_custom_call.1} parent=0
    #allocation2 [shape = 'u8[24576]{0}', space=vmem, size = 0x6000, scoped, tag = 'input window, operand 0, single buffered']
    #allocation3 [shape = 's32[1]{0}', space=sflag, size = 0x4, scoped, tag = 'scoped memory for tpu_custom_call.1']
    #allocation4 [shape = 's32[1]{0}', space=sflag, size = 0x4, scoped, tag = 'scoped memory for tpu_custom_call.1']
    #allocation5 [shape = 'u8[8192]{0}', space=vmem, size = 0x2000, scoped, tag = 'output window, operand 0, single buffered']
    %8 = vsyncpa [#allocation3], 0
    %9 = vsyncpa [#allocation4], 0
    // Predicated region
    $region2: #{tpu_custom_call.1} parent=1 // pred_check
      _
    $region3: #{tpu_custom_call.1} parent=1 // pred_check_branch
      %11 = sbr.rel (0) target = $region5
    $region4: #{tpu_custom_call.1} parent=1 // pred_region
      %13 = vsyncadd [#allocation3], 0
      %s14 = sshll.u32 %s0, 4
      %s15 = int_to_ptr.hbm [resolvable:$true] %s14
      %s16 = sshll.u32 [#allocation2], 4
      %s17 = int_to_ptr.vmem [resolvable:$true] %s16
      %22 = dma.hbm_to_vmem [thread:$0]  %s15, 768, %s17, [#allocation3], 128, 128, 8
    $region5: #{tpu_custom_call.1} parent=1 // pred_fallthru
      _
    // Predicated region
    $region6: #{tpu_custom_call.1} parent=1 // pred_check
      _
    $region7: #{tpu_custom_call.1} parent=1 // pred_check_branch
      %24 = sbr.rel (0) target = $region9
    $region8: #{tpu_custom_call.1} parent=1 // pred_region
      _
    $region9: #{tpu_custom_call.1} parent=1 // pred_fallthru
      _
    // Predicated region
    $region10: #{tpu_custom_call.1} parent=1 // pred_check
      _
    $region11: #{tpu_custom_call.1} parent=1 // pred_check_branch
      %26 = sbr.rel (0) target = $region13
    $region12: #{tpu_custom_call.1} parent=1 // pred_region
      _
    $region13: #{tpu_custom_call.1} parent=1 // pred_fallthru
      _
    // Predicated region
    $region14: #{tpu_custom_call.1} parent=1 // pred_check
      _
    $region15: #{tpu_custom_call.1} parent=1 // pred_check_branch
      %28 = sbr.rel (0) target = $region17
    $region16: #{tpu_custom_call.1} parent=1 // pred_region
      %30 = dma.done [#allocation3], 768
    $region17: #{tpu_custom_call.1} parent=1 // pred_fallthru
      _
    %v31 = vld [vmem:[#allocation2] sm:$0xff]
    %v32 = vld [vmem:[#allocation2 + $0x8] sm:$0xff]
    %v33 = vld [vmem:[#allocation2 + $0x10] sm:$0xff]
    %v34 = vld [vmem:[#allocation2 + $0x18] sm:$0xff]
    %v35 = vld [vmem:[#allocation2 + $0x20] sm:$0xff]
    %v36 = vld [vmem:[#allocation2 + $0x28] sm:$0xff]
    %v37 = vld [vmem:[%s1] sm:$0x1]
    %v38 = vld [vmem:[%s1 + $0x1] sm:$0x1]
    %v39 = vld [vmem:[%s1 + $0x2] sm:$0x1]
    %v40 = vld [vmem:[%s1 + $0x3] sm:$0x1]
    %v41 = vld [vmem:[%s1 + $0x4] sm:$0x1]
    %v42 = vld [vmem:[%s1 + $0x5] sm:$0x1]
    %v43 = vld [vmem:[%s2] sm:$0x7]
    %v44 = vld [vmem:[%s2 + $0x4] sm:$0x7]
    %v45 = vld [vmem:[%s2 + $0x8] sm:$0x7]
    %v46 = vperm.slane %v43, 0
    %v47 = vperm.slane %v44, 0
    %v48 = vperm.slane %v45, 0
    %v49 = vmul.f32 %v31, %v46
    %v50 = vmul.f32 %v32, %v46
    %v51 = vmul.f32 %v33, %v47
    %v52 = vmul.f32 %v34, %v47
    %v53 = vmul.f32 %v35, %v48
    %v54 = vmul.f32 %v36, %v48
    %vm55 = vcmask 261120
    %v56 = vsel %vm55, %v49, 0.0
    %57 = vadd.xlane.f32.xlu0 %v56
    %v58 = vpop.xlane.xlu0 %57
    %v59 = vsel %vm55, %v50, 0.0
    %60 = vadd.xlane.f32.xlu0 %v59
    %v61 = vpop.xlane.xlu0 %60
    %v62 = vsel %vm55, %v51, 0.0
    %63 = vadd.xlane.f32.xlu0 %v62
    %v64 = vpop.xlane.xlu0 %63
    %v65 = vsel %vm55, %v52, 0.0
    %66 = vadd.xlane.f32.xlu0 %v65
    %v67 = vpop.xlane.xlu0 %66
    %v68 = vsel %vm55, %v53, 0.0
    %69 = vadd.xlane.f32.xlu0 %v68
    %v70 = vpop.xlane.xlu0 %69
    %v71 = vsel %vm55, %v54, 0.0
    %72 = vadd.xlane.f32.xlu0 %v71
    %v73 = vpop.xlane.xlu0 %72
    %77 = vst [vmem:[#allocation1] sm:$0xff] %v43
    %s78 = scalar_lea.vmem [#allocation1], 1
    %v79 = vld [vmem:[%s78] ss:$9 sm:$0xff]
    %80 = vst [vmem:[#allocation1] sm:$0xff] %v43
    %v81 = vld [vmem:[%s78] ss:$9 sm:$0xff]
    %82 = vst [vmem:[#allocation1] sm:$0xff] %v44
    %v83 = vld [vmem:[%s78] ss:$9 sm:$0xff]
    %84 = vst [vmem:[#allocation1] sm:$0xff] %v44
    %v85 = vld [vmem:[%s78] ss:$9 sm:$0xff]
    %86 = vst [vmem:[#allocation1] sm:$0xff] %v45
    %v87 = vld [vmem:[%s78] ss:$9 sm:$0xff]
    %88 = vst [vmem:[#allocation1] sm:$0xff] %v45
    %v89 = vld [vmem:[%s78] ss:$9 sm:$0xff]
    %v96 = vmul.f32 %v37, %v79
    %v97 = vmul.f32 %v38, %v81
    %v98 = vmul.f32 %v39, %v83
    %v99 = vmul.f32 %v40, %v85
    %v100 = vmul.f32 %v41, %v87
    %v101 = vmul.f32 %v42, %v89
    %vm102 = vcmask 253952
    %v103 = vsel %vm102, %v96, 0.0
    %104 = vadd.xlane.f32.xlu0 %v103
    %v105 = vpop.xlane.xlu0 %104
    %v106 = vsel %vm102, %v97, 0.0
    %107 = vadd.xlane.f32.xlu0 %v106
    %v108 = vpop.xlane.xlu0 %107
    %v109 = vsel %vm102, %v98, 0.0
    %110 = vadd.xlane.f32.xlu0 %v109
    %v111 = vpop.xlane.xlu0 %110
    %v112 = vsel %vm102, %v99, 0.0
    %113 = vadd.xlane.f32.xlu0 %v112
    %v114 = vpop.xlane.xlu0 %113
    %v115 = vsel %vm102, %v100, 0.0
    %116 = vadd.xlane.f32.xlu0 %v115
    %v117 = vpop.xlane.xlu0 %116
    %v118 = vsel %vm102, %v101, 0.0
    %119 = vadd.xlane.f32.xlu0 %v118
    %v120 = vpop.xlane.xlu0 %119
    %v121 = vperm.slane %v105, 0
    %v122 = vperm.slane %v108, 0
    %v123 = vperm.slane %v111, 0
    %v124 = vperm.slane %v114, 0
    %v125 = vperm.slane %v117, 0
    %v126 = vperm.slane %v120, 0
    %v127 = vadd.f32 %v58, %v121
    %v128 = vadd.f32 %v61, %v122
    %v129 = vadd.f32 %v64, %v123
    %v130 = vadd.f32 %v67, %v124
    %v131 = vadd.f32 %v70, %v125
    %v132 = vadd.f32 %v73, %v126
    %v133 = vperm.slane %v43, 2
    %v134 = vperm.slane %v44, 2
    %v135 = vperm.slane %v45, 2
    %v136 = vadd.f32 %v127, %v133
    %v137 = vadd.f32 %v128, %v133
    %v138 = vadd.f32 %v129, %v134
    %v139 = vadd.f32 %v130, %v134
    %v140 = vadd.f32 %v131, %v135
    %v141 = vadd.f32 %v132, %v135
    %vm142 = vcmask 7168
    %v143 = vsel %vm142, %v136, -inf
    %v144 = vsel %vm142, %v138, -inf
    %v145 = vsel %vm142, %v140, -inf
    %v146 = vmax.f32 %v143, %v145
    %v147 = vmax.f32 %v146, %v144
    %v148 = vsel %vm142, %v137, -inf
    %v149 = vsel %vm142, %v139, -inf
    %v150 = vsel %vm142, %v141, -inf
    %v151 = vmax.f32 %v148, %v150
    %v152 = vmax.f32 %v151, %v149
    %v153 = vsub.f32 %v136, %v147
    %v154 = vsub.f32 %v137, %v152
    %v155 = vsub.f32 %v138, %v147
    %v156 = vsub.f32 %v139, %v152
    %v157 = vsub.f32 %v140, %v147
    %v158 = vsub.f32 %v141, %v152
    %v159 = vmul.f32 %v153, 1.442695
    %v160 = vpow.pop %v159
    %v161 = vmul.f32 %v154, 1.442695
    %v162 = vpow.pop %v161
    %v163 = vmul.f32 %v155, 1.442695
    %v164 = vpow.pop %v163
    %v165 = vmul.f32 %v156, 1.442695
    %v166 = vpow.pop %v165
    %v167 = vmul.f32 %v157, 1.442695
    %v168 = vpow.pop %v167
    %v169 = vmul.f32 %v158, 1.442695
    %v170 = vpow.pop %v169
    %v171 = vsel %vm142, %v160, 0.0
    %v172 = vsel %vm142, %v164, 0.0
    %v173 = vadd.f32 %v171, %v172
    %v174 = vsel %vm142, %v168, 0.0
    %v175 = vadd.f32 %v173, %v174
    %v176 = vsel %vm142, %v162, 0.0
    %v177 = vsel %vm142, %v166, 0.0
    %v178 = vadd.f32 %v176, %v177
    %v179 = vsel %vm142, %v170, 0.0
    %v180 = vadd.f32 %v178, %v179
    %v181 = vrcp.pop %v175
    %v182 = vmul.f32 %v175, %v181
    %v183 = vsub.f32 1.0, %v182
    %v184 = vmul.f32 %v181, %v183
    %v185 = vadd.f32 %v181, %v184
    %vm186 = vweird.f32 %v175
    %vm187 = vweird.f32 %v181
    %vm188 = vmor %vm186, %vm187
    %v189 = vsel %vm188, %v181, %v185
    %v190 = vand.u32 2147483647, %v175
    %vm191 = vcmp.eq.f32.partialorder %v190, 8.507059e+37
    %v192 = vand.u32 %v175, 2147483648
    %v193 = vor.u32 1.1754944e-38, %v192
    %v194 = vsel %vm191, %v193, %v189
    %v195 = vmul.f32 %v160, %v194
    %v196 = vrcp.pop %v180
    %v197 = vmul.f32 %v180, %v196
    %v198 = vsub.f32 1.0, %v197
    %v199 = vmul.f32 %v196, %v198
    %v200 = vadd.f32 %v196, %v199
    %vm201 = vweird.f32 %v180
    %vm202 = vweird.f32 %v196
    %vm203 = vmor %vm201, %vm202
    %v204 = vsel %vm203, %v196, %v200
    %v205 = vand.u32 2147483647, %v180
    %vm206 = vcmp.eq.f32.partialorder %v205, 8.507059e+37
    %v207 = vand.u32 %v180, 2147483648
    %v208 = vor.u32 1.1754944e-38, %v207
    %v209 = vsel %vm206, %v208, %v204
    %v210 = vmul.f32 %v162, %v209
    %v211 = vmul.f32 %v164, %v194
    %v212 = vmul.f32 %v166, %v209
    %v213 = vmul.f32 %v168, %v194
    %v214 = vmul.f32 %v170, %v209
    %216 = vset.pattern.permute.xlu0 0
    %217 = vperm.xlu0 %216, %v195
    %v218 = vpop.permute.xlu0 %217
    %221 = vset.pattern.permute.xlu0 0
    %222 = vperm.xlu0 %221, %v210
    %v223 = vpop.permute.xlu0 %222
    %226 = vset.pattern.permute.xlu0 0
    %227 = vperm.xlu0 %226, %v211
    %v228 = vpop.permute.xlu0 %227
    %231 = vset.pattern.permute.xlu0 0
    %232 = vperm.xlu0 %231, %v212
    %v233 = vpop.permute.xlu0 %232
    %236 = vset.pattern.permute.xlu0 0
    %237 = vperm.xlu0 %236, %v213
    %v238 = vpop.permute.xlu0 %237
    %241 = vset.pattern.permute.xlu0 0
    %242 = vperm.xlu0 %241, %v214
    %v243 = vpop.permute.xlu0 %242
    %v245 = vmul.f32 %v31, %v218
    %v246 = vmul.f32 %v32, %v223
    %v247 = vmul.f32 %v33, %v228
    %v248 = vmul.f32 %v34, %v233
    %v249 = vmul.f32 %v35, %v238
    %v250 = vmul.f32 %v36, %v243
    %v251 = vadd.f32 %v245, %v249
    %v252 = vadd.f32 %v251, %v248
    %253 = vst.msk [vmem:[#allocation5] sm:$0xff] %vm55, %v252
    %v254 = vadd.f32 %v247, %v246
    %v255 = vadd.f32 %v254, %v250
    %s256 = scalar_lea.vmem [#allocation5], 8
    %257 = vst.msk [vmem:[%s256] sm:$0xff] %vm55, %v255
    // Predicated region
    $region18: #{tpu_custom_call.1} parent=1 // pred_check
      _
    $region19: #{tpu_custom_call.1} parent=1 // pred_check_branch
      %259 = sbr.rel (0) target = $region21
    $region20: #{tpu_custom_call.1} parent=1 // pred_region
      %261 = vsyncadd [#allocation4], 0
      %s262 = sshll.u32 [#allocation5], 4
      %s263 = int_to_ptr.vmem [resolvable:$true] %s262
      %s264 = sshll.u32 %s3, 4
      %s265 = int_to_ptr.hbm [resolvable:$true] %s264
      %270 = dma.vmem_to_hbm [thread:$0]  %s263, 256, %s265, [#allocation4], 128, 128, 8
    $region21: #{tpu_custom_call.1} parent=1 // pred_fallthru
      _
    // Predicated region
    $region22: #{tpu_custom_call.1} parent=1 // pred_check
      _
    $region23: #{tpu_custom_call.1} parent=1 // pred_check_branch
      %272 = sbr.rel (0) target = $region25
    $region24: #{tpu_custom_call.1} parent=1 // pred_region
      %274 = dma.done [#allocation4], 256
    $region25: #{tpu_custom_call.1} parent=1 // pred_fallthru
      _
    %275 = vsyncpa [#allocation3], 1
    %276 = vsyncpa [#allocation4], 1

</llo_original>
